<compile_context>
chip_gen: v7x
topology: tpu7x:2x2x1
jax: 0.10.0
libtpu: 0.0.40
codegen_flags: <defaults>
</compile_context>

<pallas_src>
import functools

import jax
import jax.numpy as jnp
from jax.experimental import pallas as pl
from jax.experimental.pallas import tpu as pltpu

N_CLASSES = 101 + 2   # 103, as in MPPHead.__init__
LN_EPS = 1e-12        # BertConfig default layer_norm_eps
LANE = 128            # TPU lane width


def _round_up(a, b):
    return (a + b - 1) // b * b


def _pad_to(arr, shape):
    if tuple(arr.shape) == tuple(shape):
        return arr                       # skip the copy when already aligned
    pads = [(0, t - s) for s, t in zip(arr.shape, shape)]
    return jnp.pad(arr, pads)


def _vmem_capacity_bytes():
    """Physical VMEM of the current chip (fallback: 64 MiB, the v7x size)."""
    try:
        info = pltpu.get_tpu_info()
        return int(getattr(info, "vmem_capacity_bytes", 64 * 2**20))
    except Exception:
        return 64 * 2**20


def mpp_head_kernel(x_ref, w1_ref, vec_ref, w2_ref, b2_ref, out_ref, *, h_true):
    """One row tile: dense -> exact GELU -> LayerNorm -> decoder.

    vec_ref rows: 0 = b1, 1 = gamma, 2 = beta (f32, lane-padded).  Matmul
    operands may be bf16; accumulation and GELU/LayerNorm math is f32.
    """
    # ---- transform.dense : (TM, Hp) @ (Hp, Hp) + b1 --------------------------
    h = jnp.dot(x_ref[...], w1_ref[...], preferred_element_type=jnp.float32)
    h = h + vec_ref[0:1, :]

    # ---- exact GELU (erf form, matches torch) --------------------------------
    # Padded lanes stay exactly zero: gelu(0) == 0.
    h = 0.5 * h * (1.0 + jax.lax.erf(h * jnp.float32(0.7071067811865476)))

    # ---- LayerNorm over the *true* hidden width, eps = 1e-12 ------------------
    h_pad = h.shape[-1]
    inv_h = jnp.float32(1.0 / h_true)
    # Pad lanes of h are zero, so a full-lane sum equals the true-lane sum.
    mean = jnp.sum(h, axis=-1, keepdims=True) * inv_h
    if h_pad == h_true:
        centered = h - mean
    else:
        lane_idx = jax.lax.broadcasted_iota(jnp.int32, h.shape, dimension=1)
        centered = jnp.where(lane_idx < h_true, h - mean, 0.0)
    var = jnp.sum(centered * centered, axis=-1, keepdims=True) * inv_h
    h = centered * jax.lax.rsqrt(var + LN_EPS)
    h = h * vec_ref[1:2, :] + vec_ref[2:3, :]        # pad lanes remain zero

    # ---- decoder : (TM, Hp) @ (Hp, Cp) + b2 -----------------------------------
    out = jnp.dot(h.astype(w2_ref.dtype), w2_ref[...],
                  preferred_element_type=jnp.float32)
    out_ref[...] = (out + b2_ref[...]).astype(out_ref.dtype)


@functools.partial(
    jax.jit, static_argnames=("tile_rows", "use_bf16", "single_buffer_params"))
def mpp_head(x, params, *, tile_rows=None, use_bf16=True,
             single_buffer_params=True):
    """x: (B, S, H).  Returns (B, S, 103) in x.dtype.

    tile_rows: row tile (default: 512 on 128-MiB-VMEM chips, 256 on v7x).
    use_bf16: feed the MXU bf16 operands (f32 accumulation / LN math).
    single_buffer_params: pl.Buffered(1) on the VMEM-resident weights.
    """
    B, S, H = x.shape
    N = B * S
    out_dtype = x.dtype

    # Lane-dense padded sizes.
    H_pad = _round_up(max(H, LANE), LANE)
    C_pad = _round_up(N_CLASSES, LANE)               # 103 -> 128

    mm_dtype = jnp.bfloat16 if use_bf16 else jnp.float32
    bpe_mm = jnp.dtype(mm_dtype).itemsize
    bpe_out = jnp.dtype(out_dtype).itemsize

    vmem_cap = _vmem_capacity_bytes()
    if tile_rows is None:
        # 128-MiB VMEM chips (v5e/v6e) take a bigger row tile than v7x (64 MiB).
        tile_rows = 512 if vmem_cap >= 96 * 2**20 else 256

    # Row tile: aligned to the sublane packing of the matmul dtype.
    row_align = 16 if (use_bf16 or out_dtype == jnp.bfloat16) else 8
    n_al = _round_up(N, row_align)
    tm = min(_round_up(tile_rows, row_align), n_al)
    # Keep >= 2 grid steps whenever possible so ("parallel",) actually feeds
    # both v7x TensorCores.
    if n_al // tm < 2 and n_al >= 2 * row_align:
        tm = _round_up(pl.cdiv(n_al, 2), row_align)
    N_pad = _round_up(N, tm)

    # ---- wrapper-side layout plumbing (zero padding; sliced off afterwards) ---
    x2 = _pad_to(x.reshape(N, H).astype(mm_dtype), (N_pad, H_pad))
    w1 = _pad_to(params["w1"].astype(mm_dtype), (H_pad, H_pad))
    w2 = _pad_to(params["w2"].astype(mm_dtype), (H_pad, C_pad))
    # b1 / gamma / beta packed into a single sublane-aligned (8, H_pad) block.
    vec = jnp.zeros((8, H_pad), jnp.float32)
    vec = vec.at[0, :H].set(params["b1"].astype(jnp.float32))
    vec = vec.at[1, :H].set(params["gamma"].astype(jnp.float32))
    vec = vec.at[2, :H].set(params["beta"].astype(jnp.float32))
    b2 = _pad_to(params["b2"].reshape(1, N_CLASSES).astype(jnp.float32),
                 (1, C_pad))

    grid = (N_pad // tm,)

    def _const_spec(shape):
        # Constant block index -> fetched once, VMEM-resident.  Single-buffered
        # to avoid a wasted second copy of w1/w2.
        if single_buffer_params:
            return pl.BlockSpec(shape, lambda i: (0,) * len(shape),
                                pipeline_mode=pl.Buffered(1))
        return pl.BlockSpec(shape, lambda i: (0,) * len(shape))

    # Explicit VMEM budget: x/out tiles double-buffered, params single-buffered.
    pbuf = 1 if single_buffer_params else 2
    need = (2 * tm * H_pad * bpe_mm
            + pbuf * (H_pad * H_pad * bpe_mm + H_pad * C_pad * bpe_mm
                      + 8 * H_pad * 4 + 8 * C_pad * 4)
            + 2 * tm * C_pad * bpe_out)
    cap = (vmem_cap * 7) // 8           # ~112 MiB on v5e/v6e, ~56 MiB on v7x
    vmem_limit = int(min(max(need * 3 // 2, 32 * 2**20), cap))
    # TODO(synk): for very large H where even bf16 weights exceed the cap, split
    # w1's columns over a second grid axis with a (tm, H_pad) scratch for h.

    flops = 2 * N_pad * H_pad * (H_pad + C_pad)
    transcendentals = N_pad * H_pad
    bytes_accessed = (N_pad * H_pad * bpe_mm + H_pad * H_pad * bpe_mm
                      + H_pad * C_pad * bpe_mm + 8 * H_pad * 4 + 8 * C_pad * 4
                      + N_pad * C_pad * bpe_out)

    out = pl.pallas_call(
        functools.partial(mpp_head_kernel, h_true=H),
        out_shape=jax.ShapeDtypeStruct((N_pad, C_pad), out_dtype),
        grid_spec=pltpu.PrefetchScalarGridSpec(
            num_scalar_prefetch=0,
            grid=grid,
            in_specs=[
                # streaming row tile of the input
                pl.BlockSpec((tm, H_pad), lambda i: (i, 0)),
                _const_spec((H_pad, H_pad)),     # w1
                _const_spec((8, H_pad)),         # packed b1 / gamma / beta
                _const_spec((H_pad, C_pad)),     # w2
                _const_spec((1, C_pad)),         # b2
            ],
            # lane-dense (128-wide) output tile -> unmasked vector stores
            out_specs=pl.BlockSpec((tm, C_pad), lambda i: (i, 0)),
        ),
        compiler_params=pltpu.CompilerParams(
            dimension_semantics=("parallel",),
            vmem_limit_bytes=vmem_limit,
        ),
        cost_estimate=pl.CostEstimate(
            flops=flops,
            transcendentals=transcendentals,
            bytes_accessed=bytes_accessed,
        ),
    )(x2, w1, vec, w2, b2)

    # Strip row / class padding (pure layout plumbing); dtype already matches x.
    return out[:N, :N_CLASSES].reshape(B, S, N_CLASSES)


def init_params(key, hid_dim):
    """Deterministic synthetic parameter init (shapes match MPPHead)."""
    k1, k2, k3, k4 = jax.random.split(key, 4)
    scale1 = 1.0 / jnp.sqrt(jnp.float32(hid_dim))
    return {
        # BertPredictionHeadTransform.dense: Linear(H, H)
        "w1": jax.random.normal(k1, (hid_dim, hid_dim), jnp.float32) * scale1,
        "b1": jax.random.normal(k2, (hid_dim,), jnp.float32) * 0.02,
        # BertPredictionHeadTransform.LayerNorm(H)
        "gamma": jnp.ones((hid_dim,), jnp.float32),
        "beta": jnp.zeros((hid_dim,), jnp.float32),
        # decoder: Linear(H, 103)
        "w2": jax.random.normal(k3, (hid_dim, N_CLASSES), jnp.float32) * scale1,
        "b2": jax.random.normal(k4, (N_CLASSES,), jnp.float32) * 0.02,
    }


def mpp_head_ref(x, params):
    """Pure-JAX f32 reference of the PyTorch forward (for sanity checking)."""
    h = jnp.einsum("bsh,hk->bsk", x, params["w1"]) + params["b1"]
    h = 0.5 * h * (1.0 + jax.lax.erf(h / jnp.sqrt(2.0)))
    mean = jnp.mean(h, axis=-1, keepdims=True)
    var = jnp.mean((h - mean) ** 2, axis=-1, keepdims=True)
    h = (h - mean) / jnp.sqrt(var + LN_EPS)
    h = h * params["gamma"] + params["beta"]
    return jnp.einsum("bsh,hk->bsk", h, params["w2"]) + params["b2"]


if __name__ == "__main__":
    B, S, H = 2, 8, 32  # batch=2, seq=8, hidden=32 (small demo shapes)

    key = jax.random.PRNGKey(0)
    kx, kp = jax.random.split(key)
    x = jax.random.normal(kx, (B, S, H), jnp.float32)
    params = init_params(kp, H)
    ref = mpp_head_ref(x, params)

    def call(**kw):
        try:
            return jax.block_until_ready(mpp_head(x, params, **kw))
        except Exception:
            # Fallback if pl.Buffered(1) is rejected by this jax/Mosaic version.
            return jax.block_until_ready(
                mpp_head(x, params, single_buffer_params=False, **kw))

    out_bf16 = call()                    # default path: bf16 MXU operands
    out_f32 = call(use_bf16=False)       # f32 path for tight validation

    assert out_bf16.shape == (B, S, N_CLASSES), out_bf16.shape
    assert jnp.allclose(out_f32, ref, atol=1e-4, rtol=1e-4), (
        float(jnp.max(jnp.abs(out_f32 - ref))))
    assert jnp.allclose(out_bf16, ref, atol=5e-2, rtol=5e-2), (
        float(jnp.max(jnp.abs(out_bf16 - ref))))

    print("KERNEL_OK")
</pallas_src>

<mosaic_0001>
module attributes {stable_mosaic.version = 11 : i64} {
  func.func @mpp_head_kernel(%arg0: i32, %arg1: memref<16x128xbf16, #tpu.memory_space<vmem>>, %arg2: memref<128x128xbf16, #tpu.memory_space<vmem>>, %arg3: memref<8x128xf32, #tpu.memory_space<vmem>>, %arg4: memref<128x128xbf16, #tpu.memory_space<vmem>>, %arg5: memref<1x128xf32, #tpu.memory_space<vmem>>, %arg6: memref<16x128xf32, #tpu.memory_space<vmem>>) attributes {dimension_semantics = [#tpu.dimension_semantics<parallel>], iteration_bounds = array<i64: 1>, scalar_prefetch = 0 : i64, scratch_operands = 0 : i64, tpu.core_type = #tpu.core_type<tc>, window_params = [{transform_indices = @transform_0, window_bounds = array<i64: 16, 128>}, {pipeline_mode = #tpu.pipeline_mode<synchronous>, transform_indices = @transform_1, window_bounds = array<i64: 128, 128>}, {pipeline_mode = #tpu.pipeline_mode<synchronous>, transform_indices = @transform_2, window_bounds = array<i64: 8, 128>}, {pipeline_mode = #tpu.pipeline_mode<synchronous>, transform_indices = @transform_3, window_bounds = array<i64: 128, 128>}, {pipeline_mode = #tpu.pipeline_mode<synchronous>, transform_indices = @transform_4, window_bounds = array<i64: 1, 128>}, {transform_indices = @transform_5, window_bounds = array<i64: 16, 128>}]} {
    %c0 = arith.constant 0 : index
    %c0_0 = arith.constant 0 : index
    %0 = vector.load %arg1[%c0, %c0_0] : memref<16x128xbf16, #tpu.memory_space<vmem>>, vector<16x128xbf16>
    %c0_1 = arith.constant 0 : index
    %c0_2 = arith.constant 0 : index
    %1 = vector.load %arg2[%c0_1, %c0_2] : memref<128x128xbf16, #tpu.memory_space<vmem>>, vector<128x128xbf16>
    %cst = arith.constant dense<0.000000e+00> : vector<16x128xf32>
    %2 = tpu.matmul %0, %1, %cst {dimension_numbers = #tpu.dot_dimension_numbers<[1], [0], [0], [1], [0, 0, 1, 1], [], []>} : vector<16x128xbf16>, vector<128x128xbf16>, vector<16x128xf32> -> vector<16x128xf32>
    %c0_3 = arith.constant 0 : index
    %c0_4 = arith.constant 0 : index
    %3 = vector.load %arg3[%c0_3, %c0_4] : memref<8x128xf32, #tpu.memory_space<vmem>>, vector<1x128xf32>
    %4 = vector.broadcast %3 : vector<1x128xf32> to vector<16x128xf32>
    %5 = arith.addf %2, %4 : vector<16x128xf32>
    %cst_5 = arith.constant 5.000000e-01 : f32
    %6 = vector.broadcast %cst_5 : f32 to vector<16x128xf32>
    %7 = arith.mulf %6, %5 : vector<16x128xf32>
    %cst_6 = arith.constant 0.707106769 : f32
    %8 = vector.broadcast %cst_6 : f32 to vector<16x128xf32>
    %9 = arith.mulf %5, %8 : vector<16x128xf32>
    %10 = math.erf %9 : vector<16x128xf32>
    %cst_7 = arith.constant 1.000000e+00 : f32
    %11 = vector.broadcast %cst_7 : f32 to vector<16x128xf32>
    %12 = arith.addf %11, %10 : vector<16x128xf32>
    %13 = arith.mulf %7, %12 : vector<16x128xf32>
    %cst_8 = arith.constant dense<0.000000e+00> : vector<16xf32>
    %14 = vector.multi_reduction <add>, %13, %cst_8 [1] : vector<16x128xf32> to vector<16xf32>
    %15 = vector.shape_cast %14 : vector<16xf32> to vector<16x1xf32>
    %cst_9 = arith.constant 3.125000e-02 : f32
    %16 = vector.broadcast %cst_9 : f32 to vector<16x1xf32>
    %17 = arith.mulf %15, %16 : vector<16x1xf32>
    %18 = tpu.iota {dimensions = array<i32: 1>} : vector<16x128xi32>
    %c32_i32 = arith.constant 32 : i32
    %19 = vector.broadcast %c32_i32 : i32 to vector<16x128xi32>
    %20 = arith.cmpi slt, %18, %19 : vector<16x128xi32>
    %21 = vector.broadcast %17 : vector<16x1xf32> to vector<16x128xf32>
    %22 = arith.subf %13, %21 : vector<16x128xf32>
    %cst_10 = arith.constant 0.000000e+00 : f32
    %23 = vector.broadcast %cst_10 : f32 to vector<16x128xf32>
    %24 = arith.select %20, %22, %23 : vector<16x128xi1>, vector<16x128xf32>
    %25 = arith.mulf %24, %24 : vector<16x128xf32>
    %cst_11 = arith.constant dense<0.000000e+00> : vector<16xf32>
    %26 = vector.multi_reduction <add>, %25, %cst_11 [1] : vector<16x128xf32> to vector<16xf32>
    %27 = vector.shape_cast %26 : vector<16xf32> to vector<16x1xf32>
    %cst_12 = arith.constant 3.125000e-02 : f32
    %28 = vector.broadcast %cst_12 : f32 to vector<16x1xf32>
    %29 = arith.mulf %27, %28 : vector<16x1xf32>
    %cst_13 = arith.constant 9.99999996E-13 : f32
    %30 = vector.broadcast %cst_13 : f32 to vector<16x1xf32>
    %31 = arith.addf %29, %30 : vector<16x1xf32>
    %32 = math.rsqrt %31 : vector<16x1xf32>
    %33 = vector.broadcast %32 : vector<16x1xf32> to vector<16x128xf32>
    %34 = arith.mulf %24, %33 : vector<16x128xf32>
    %c1 = arith.constant 1 : index
    %c0_14 = arith.constant 0 : index
    %35 = vector.load %arg3[%c1, %c0_14] : memref<8x128xf32, #tpu.memory_space<vmem>>, vector<1x128xf32>
    %36 = vector.broadcast %35 : vector<1x128xf32> to vector<16x128xf32>
    %37 = arith.mulf %34, %36 : vector<16x128xf32>
    %c2 = arith.constant 2 : index
    %c0_15 = arith.constant 0 : index
    %38 = vector.load %arg3[%c2, %c0_15] : memref<8x128xf32, #tpu.memory_space<vmem>>, vector<1x128xf32>
    %39 = vector.broadcast %38 : vector<1x128xf32> to vector<16x128xf32>
    %40 = arith.addf %37, %39 : vector<16x128xf32>
    %41 = arith.truncf %40 : vector<16x128xf32> to vector<16x128xbf16>
    %c0_16 = arith.constant 0 : index
    %c0_17 = arith.constant 0 : index
    %42 = vector.load %arg4[%c0_16, %c0_17] : memref<128x128xbf16, #tpu.memory_space<vmem>>, vector<128x128xbf16>
    %cst_18 = arith.constant dense<0.000000e+00> : vector<16x128xf32>
    %43 = tpu.matmul %41, %42, %cst_18 {dimension_numbers = #tpu.dot_dimension_numbers<[1], [0], [0], [1], [0, 0, 1, 1], [], []>} : vector<16x128xbf16>, vector<128x128xbf16>, vector<16x128xf32> -> vector<16x128xf32>
    %c0_19 = arith.constant 0 : index
    %c0_20 = arith.constant 0 : index
    %44 = vector.load %arg5[%c0_19, %c0_20] : memref<1x128xf32, #tpu.memory_space<vmem>>, vector<1x128xf32>
    %45 = vector.broadcast %44 : vector<1x128xf32> to vector<16x128xf32>
    %46 = arith.addf %43, %45 : vector<16x128xf32>
    %c0_21 = arith.constant 0 : index
    %c0_22 = arith.constant 0 : index
    %47 = vector.load %arg6[%c0_21, %c0_22] : memref<16x128xf32, #tpu.memory_space<vmem>>, vector<16x128xf32>
    tpu.vector_store %arg6[%c0_21, %c0_22], %46 {strides = array<i32>} : memref<16x128xf32, #tpu.memory_space<vmem>>, vector<16x128xf32>,
    return
  }
  func.func @transform_0(%arg0: i32) -> (i32, i32) {
    %c0_i32 = arith.constant 0 : i32
    %c0_i32_0 = arith.constant 0 : i32
    return %arg0, %c0_i32 : i32, i32
  }
  func.func @transform_1(%arg0: i32) -> (i32, i32) {
    %c0_i32 = arith.constant 0 : i32
    %c0_i32_0 = arith.constant 0 : i32
    %c0_i32_1 = arith.constant 0 : i32
    return %c0_i32, %c0_i32_0 : i32, i32
  }
  func.func @transform_2(%arg0: i32) -> (i32, i32) {
    %c0_i32 = arith.constant 0 : i32
    %c0_i32_0 = arith.constant 0 : i32
    %c0_i32_1 = arith.constant 0 : i32
    return %c0_i32, %c0_i32_0 : i32, i32
  }
  func.func @transform_3(%arg0: i32) -> (i32, i32) {
    %c0_i32 = arith.constant 0 : i32
    %c0_i32_0 = arith.constant 0 : i32
    %c0_i32_1 = arith.constant 0 : i32
    return %c0_i32, %c0_i32_0 : i32, i32
  }
  func.func @transform_4(%arg0: i32) -> (i32, i32) {
    %c0_i32 = arith.constant 0 : i32
    %c0_i32_0 = arith.constant 0 : i32
    %c0_i32_1 = arith.constant 0 : i32
    return %c0_i32, %c0_i32_0 : i32, i32
  }
  func.func @transform_5(%arg0: i32) -> (i32, i32) {
    %c0_i32 = arith.constant 0 : i32
    %c0_i32_0 = arith.constant 0 : i32
    return %arg0, %c0_i32 : i32, i32
  }
}

module attributes {stable_mosaic.version = 11 : i64} {
  func.func @mpp_head_kernel(%arg0: i32, %arg1: memref<16x128xbf16, #tpu.memory_space<vmem>>, %arg2: memref<128x128xbf16, #tpu.memory_space<vmem>>, %arg3: memref<8x128xf32, #tpu.memory_space<vmem>>, %arg4: memref<128x128xbf16, #tpu.memory_space<vmem>>, %arg5: memref<1x128xf32, #tpu.memory_space<vmem>>, %arg6: memref<16x128xf32, #tpu.memory_space<vmem>>) attributes {dimension_semantics = [#tpu.dimension_semantics<parallel>], iteration_bounds = array<i64: 1>, scalar_prefetch = 0 : i64, scratch_operands = 0 : i64, tpu.core_type = #tpu.core_type<tc>, window_params = [{transform_indices = @transform_0, window_bounds = array<i64: 16, 128>}, {pipeline_mode = #tpu.pipeline_mode<synchronous>, transform_indices = @transform_1, window_bounds = array<i64: 128, 128>}, {pipeline_mode = #tpu.pipeline_mode<synchronous>, transform_indices = @transform_2, window_bounds = array<i64: 8, 128>}, {pipeline_mode = #tpu.pipeline_mode<synchronous>, transform_indices = @transform_3, window_bounds = array<i64: 128, 128>}, {pipeline_mode = #tpu.pipeline_mode<synchronous>, transform_indices = @transform_4, window_bounds = array<i64: 1, 128>}, {transform_indices = @transform_5, window_bounds = array<i64: 16, 128>}]} {
    %c0 = arith.constant 0 : index
    %c0_0 = arith.constant 0 : index
    %0 = vector.load %arg1[%c0, %c0_0] : memref<16x128xbf16, #tpu.memory_space<vmem>>, vector<16x128xbf16>
    %c0_1 = arith.constant 0 : index
    %c0_2 = arith.constant 0 : index
    %1 = vector.load %arg2[%c0_1, %c0_2] : memref<128x128xbf16, #tpu.memory_space<vmem>>, vector<128x128xbf16>
    %cst = arith.constant dense<0.000000e+00> : vector<16x128xf32>
    %2 = tpu.matmul %0, %1, %cst {dimension_numbers = #tpu.dot_dimension_numbers<[1], [0], [0], [1], [0, 0, 1, 1], [], []>} : vector<16x128xbf16>, vector<128x128xbf16>, vector<16x128xf32> -> vector<16x128xf32>
    %c0_3 = arith.constant 0 : index
    %c0_4 = arith.constant 0 : index
    %3 = vector.load %arg3[%c0_3, %c0_4] : memref<8x128xf32, #tpu.memory_space<vmem>>, vector<1x128xf32>
    %4 = vector.broadcast %3 : vector<1x128xf32> to vector<16x128xf32>
    %5 = arith.addf %2, %4 : vector<16x128xf32>
    %cst_5 = arith.constant 5.000000e-01 : f32
    %6 = vector.broadcast %cst_5 : f32 to vector<16x128xf32>
    %7 = arith.mulf %6, %5 : vector<16x128xf32>
    %cst_6 = arith.constant 0.707106769 : f32
    %8 = vector.broadcast %cst_6 : f32 to vector<16x128xf32>
    %9 = arith.mulf %5, %8 : vector<16x128xf32>
    %10 = math.erf %9 : vector<16x128xf32>
    %cst_7 = arith.constant 1.000000e+00 : f32
    %11 = vector.broadcast %cst_7 : f32 to vector<16x128xf32>
    %12 = arith.addf %11, %10 : vector<16x128xf32>
    %13 = arith.mulf %7, %12 : vector<16x128xf32>
    %cst_8 = arith.constant dense<0.000000e+00> : vector<16xf32>
    %14 = vector.multi_reduction <add>, %13, %cst_8 [1] : vector<16x128xf32> to vector<16xf32>
    %15 = vector.shape_cast %14 : vector<16xf32> to vector<16x1xf32>
    %cst_9 = arith.constant 3.125000e-02 : f32
    %16 = vector.broadcast %cst_9 : f32 to vector<16x1xf32>
    %17 = arith.mulf %15, %16 : vector<16x1xf32>
    %18 = tpu.iota {dimensions = array<i32: 1>} : vector<16x128xi32>
    %c32_i32 = arith.constant 32 : i32
    %19 = vector.broadcast %c32_i32 : i32 to vector<16x128xi32>
    %20 = arith.cmpi slt, %18, %19 : vector<16x128xi32>
    %21 = vector.broadcast %17 : vector<16x1xf32> to vector<16x128xf32>
    %22 = arith.subf %13, %21 : vector<16x128xf32>
    %cst_10 = arith.constant 0.000000e+00 : f32
    %23 = vector.broadcast %cst_10 : f32 to vector<16x128xf32>
    %24 = arith.select %20, %22, %23 : vector<16x128xi1>, vector<16x128xf32>
    %25 = arith.mulf %24, %24 : vector<16x128xf32>
    %cst_11 = arith.constant dense<0.000000e+00> : vector<16xf32>
    %26 = vector.multi_reduction <add>, %25, %cst_11 [1] : vector<16x128xf32> to vector<16xf32>
    %27 = vector.shape_cast %26 : vector<16xf32> to vector<16x1xf32>
    %cst_12 = arith.constant 3.125000e-02 : f32
    %28 = vector.broadcast %cst_12 : f32 to vector<16x1xf32>
    %29 = arith.mulf %27, %28 : vector<16x1xf32>
    %cst_13 = arith.constant 9.99999996E-13 : f32
    %30 = vector.broadcast %cst_13 : f32 to vector<16x1xf32>
    %31 = arith.addf %29, %30 : vector<16x1xf32>
    %32 = math.rsqrt %31 : vector<16x1xf32>
    %33 = vector.broadcast %32 : vector<16x1xf32> to vector<16x128xf32>
    %34 = arith.mulf %24, %33 : vector<16x128xf32>
    %c1 = arith.constant 1 : index
    %c0_14 = arith.constant 0 : index
    %35 = vector.load %arg3[%c1, %c0_14] : memref<8x128xf32, #tpu.memory_space<vmem>>, vector<1x128xf32>
    %36 = vector.broadcast %35 : vector<1x128xf32> to vector<16x128xf32>
    %37 = arith.mulf %34, %36 : vector<16x128xf32>
    %c2 = arith.constant 2 : index
    %c0_15 = arith.constant 0 : index
    %38 = vector.load %arg3[%c2, %c0_15] : memref<8x128xf32, #tpu.memory_space<vmem>>, vector<1x128xf32>
    %39 = vector.broadcast %38 : vector<1x128xf32> to vector<16x128xf32>
    %40 = arith.addf %37, %39 : vector<16x128xf32>
    %41 = arith.truncf %40 : vector<16x128xf32> to vector<16x128xbf16>
    %c0_16 = arith.constant 0 : index
    %c0_17 = arith.constant 0 : index
    %42 = vector.load %arg4[%c0_16, %c0_17] : memref<128x128xbf16, #tpu.memory_space<vmem>>, vector<128x128xbf16>
    %cst_18 = arith.constant dense<0.000000e+00> : vector<16x128xf32>
    %43 = tpu.matmul %41, %42, %cst_18 {dimension_numbers = #tpu.dot_dimension_numbers<[1], [0], [0], [1], [0, 0, 1, 1], [], []>} : vector<16x128xbf16>, vector<128x128xbf16>, vector<16x128xf32> -> vector<16x128xf32>
    %c0_19 = arith.constant 0 : index
    %c0_20 = arith.constant 0 : index
    %44 = vector.load %arg5[%c0_19, %c0_20] : memref<1x128xf32, #tpu.memory_space<vmem>>, vector<1x128xf32>
    %45 = vector.broadcast %44 : vector<1x128xf32> to vector<16x128xf32>
    %46 = arith.addf %43, %45 : vector<16x128xf32>
    %c0_21 = arith.constant 0 : index
    %c0_22 = arith.constant 0 : index
    %47 = vector.load %arg6[%c0_21, %c0_22] : memref<16x128xf32, #tpu.memory_space<vmem>>, vector<16x128xf32>
    tpu.vector_store %arg6[%c0_21, %c0_22], %46 {strides = array<i32>} : memref<16x128xf32, #tpu.memory_space<vmem>>, vector<16x128xf32>,
    return
  }
  func.func @transform_0(%arg0: i32) -> (i32, i32) {
    %c0_i32 = arith.constant 0 : i32
    %c0_i32_0 = arith.constant 0 : i32
    return %arg0, %c0_i32 : i32, i32
  }
  func.func @transform_1(%arg0: i32) -> (i32, i32) {
    %c0_i32 = arith.constant 0 : i32
    %c0_i32_0 = arith.constant 0 : i32
    %c0_i32_1 = arith.constant 0 : i32
    return %c0_i32, %c0_i32_0 : i32, i32
  }
  func.func @transform_2(%arg0: i32) -> (i32, i32) {
    %c0_i32 = arith.constant 0 : i32
    %c0_i32_0 = arith.constant 0 : i32
    %c0_i32_1 = arith.constant 0 : i32
    return %c0_i32, %c0_i32_0 : i32, i32
  }
  func.func @transform_3(%arg0: i32) -> (i32, i32) {
    %c0_i32 = arith.constant 0 : i32
    %c0_i32_0 = arith.constant 0 : i32
    %c0_i32_1 = arith.constant 0 : i32
    return %c0_i32, %c0_i32_0 : i32, i32
  }
  func.func @transform_4(%arg0: i32) -> (i32, i32) {
    %c0_i32 = arith.constant 0 : i32
    %c0_i32_0 = arith.constant 0 : i32
    %c0_i32_1 = arith.constant 0 : i32
    return %c0_i32, %c0_i32_0 : i32, i32
  }
  func.func @transform_5(%arg0: i32) -> (i32, i32) {
    %c0_i32 = arith.constant 0 : i32
    %c0_i32_0 = arith.constant 0 : i32
    return %arg0, %c0_i32 : i32, i32
  }
}

</mosaic_0001>

<llo_original>
// kernel: mpp_head.1
$region0: #{mpp_head.1}
  #allocation0 [shape = 'u32[]', space=smem, size = 0x4, offset = 0x4, fixed_abs, tag = 'smem constant byte address 0x4 - core index']
  #allocation1 [shape = 'u32[144,128]{1,0:T(1,128)}', space=vmem, size = 0x12000, scoped, tag = 'internal scratch']
  %s0 = inlined_call_operand.vmem [shape: bf16[16,128], index: 0, kind: input, shape index: {}]
  %s1 = inlined_call_operand.vmem [shape: bf16[128,128], index: 1, kind: input, shape index: {}]
  %s2 = inlined_call_operand.vmem [shape: f32[8,128], index: 2, kind: input, shape index: {}]
  %s3 = inlined_call_operand.vmem [shape: bf16[128,128], index: 3, kind: input, shape index: {}]
  %s4 = inlined_call_operand.vmem [shape: f32[1,128], index: 4, kind: input, shape index: {}]
  %s5 = inlined_call_operand.vmem [shape: f32[16,128], index: 5, kind: output, shape index: {}]
  %s6 = sld [smem:[#allocation0]]
  $region30: #{mpp_head.1} parent=0
    _
  %s8 = ssub.s32 1, %s6
  %s9 = scalar_select 0, %s8, %s6
  // Predicated region
  $region2: #{mpp_head.1} parent=0 // pred_check
    _
  $region3: #{mpp_head.1} parent=0 // pred_check_branch
    %11 = sbr.rel (0) target = $region5
  $region4: #{mpp_head.1} parent=0 // pred_region
    _
  $region5: #{mpp_head.1} parent=0 // pred_fallthru
    _
  // Predicated region
  $region6: #{mpp_head.1} parent=0 // pred_check
    _
  $region7: #{mpp_head.1} parent=0 // pred_check_branch
    %13 = sbr.rel (0) target = $region9
  $region8: #{mpp_head.1} parent=0 // pred_region
    _
  $region9: #{mpp_head.1} parent=0 // pred_fallthru
    _
  // Predicated region
  $region10: #{mpp_head.1} parent=0 // pred_check
    _
  $region11: #{mpp_head.1} parent=0 // pred_check_branch
    %15 = sbr.rel (0) target = $region13
  $region12: #{mpp_head.1} parent=0 // pred_region
    _
  $region13: #{mpp_head.1} parent=0 // pred_fallthru
    _
  // Predicated region
  $region14: #{mpp_head.1} parent=0 // pred_check
    _
  $region15: #{mpp_head.1} parent=0 // pred_check_branch
    %17 = sbr.rel (0) target = $region17
  $region16: #{mpp_head.1} parent=0 // pred_region
    _
  $region17: #{mpp_head.1} parent=0 // pred_fallthru
    _
  // Predicated region
  $region18: #{mpp_head.1} parent=0 // pred_check
    _
  $region19: #{mpp_head.1} parent=0 // pred_check_branch
    %19 = sbr.rel (0) target = $region21
  $region20: #{mpp_head.1} parent=0 // pred_region
    _
  $region21: #{mpp_head.1} parent=0 // pred_fallthru
    _
  %v21 = vld [vmem:[%s0] sm:$0xf]
  %v22 = vld [vmem:[%s0 + $0x4] sm:$0xf]
  %v23 = vld [vmem:[%s1] sm:$0xf]
  %v24 = vld [vmem:[%s1 + $0x4] sm:$0xf]
  %v25 = vld [vmem:[%s1 + $0x8] sm:$0xf]
  %v26 = vld [vmem:[%s1 + $0xc] sm:$0xf]
  %v27 = vld [vmem:[%s1 + $0x10] sm:$0xf]
  %v28 = vld [vmem:[%s1 + $0x14] sm:$0xf]
  %v29 = vld [vmem:[%s1 + $0x18] sm:$0xf]
  %v30 = vld [vmem:[%s1 + $0x1c] sm:$0xf]
  %v31 = vld [vmem:[%s1 + $0x20] sm:$0xf]
  %v32 = vld [vmem:[%s1 + $0x24] sm:$0xf]
  %v33 = vld [vmem:[%s1 + $0x28] sm:$0xf]
  %v34 = vld [vmem:[%s1 + $0x2c] sm:$0xf]
  %v35 = vld [vmem:[%s1 + $0x30] sm:$0xf]
  %v36 = vld [vmem:[%s1 + $0x34] sm:$0xf]
  %v37 = vld [vmem:[%s1 + $0x38] sm:$0xf]
  %v38 = vld [vmem:[%s1 + $0x3c] sm:$0xf]
  %v39 = vld [vmem:[%s2] sm:$0x1]
  %v40 = vlaneseq
  %v41 = vshrl.u32 %v40, 7
  %v42 = vsub.s32 0, %v41
  %v43 = vrot.slane %v39, %v42
  %v46 = vunpack.c.l.b16 %v21
  %v47 = vunpack.c.l.b16 %v22
  %v48 = vpack.c.b16 %v47, %v46
  %v66 = vunpack.c.l.b16 %v23
  %v67 = vunpack.c.l.b16 %v24
  %v68 = vunpack.c.l.b16 %v25
  %v69 = vunpack.c.l.b16 %v26
  %v70 = vunpack.c.l.b16 %v27
  %v71 = vunpack.c.l.b16 %v28
  %v72 = vunpack.c.l.b16 %v29
  %v73 = vunpack.c.l.b16 %v30
  %v74 = vunpack.c.l.b16 %v31
  %v75 = vunpack.c.l.b16 %v32
  %v76 = vunpack.c.l.b16 %v33
  %v77 = vunpack.c.l.b16 %v34
  %v78 = vunpack.c.l.b16 %v35
  %v79 = vunpack.c.l.b16 %v36
  %v80 = vunpack.c.l.b16 %v37
  %v81 = vunpack.c.l.b16 %v38
  %v82 = vpack.c.b16 %v67, %v66
  %v83 = vpack.c.b16 %v69, %v68
  %v84 = vpack.c.b16 %v71, %v70
  %v85 = vpack.c.b16 %v73, %v72
  %v86 = vpack.c.b16 %v75, %v74
  %v87 = vpack.c.b16 %v77, %v76
  %v88 = vpack.c.b16 %v79, %v78
  %v89 = vpack.c.b16 %v81, %v80
  %98 = vmatprep.subr.bf16.mxu0 0
  %99 = vmatpush1.bf16.msra.mxu0 %v82
  %100 = vmatprep.subr.bf16.mxu0 0
  %101 = vmatpush1.bf16.msra.mxu0 %v83
  %102 = vmatprep.subr.bf16.mxu0 0
  %103 = vmatpush1.bf16.msra.mxu0 %v84
  %104 = vmatprep.subr.bf16.mxu0 0
  %105 = vmatpush1.bf16.msra.mxu0 %v85
  %106 = vmatprep.subr.bf16.mxu0 0
  %107 = vmatpush1.bf16.msra.mxu0 %v86
  %108 = vmatprep.subr.bf16.mxu0 0
  %109 = vmatpush1.bf16.msra.mxu0 %v87
  %110 = vmatprep.subr.bf16.mxu0 0
  %111 = vmatpush1.bf16.msra.mxu0 %v88
  %112 = vmatprep.subr.bf16.mxu0 0
  %113 = vmatpush1.bf16.msra.mxu0 %v89
  %114 = vmatprep.subr.bf16.mxu0 0
  %115 = vmatpush1.bf16.msra.mxu0 0
  %116 = vmatprep.subr.bf16.mxu0 0
  %117 = vmatpush1.bf16.msra.mxu0 0
  %118 = vmatprep.subr.bf16.mxu0 0
  %119 = vmatpush1.bf16.msra.mxu0 0
  %120 = vmatprep.subr.bf16.mxu0 0
  %121 = vmatpush1.bf16.msra.mxu0 0
  %122 = vmatprep.subr.bf16.mxu0 0
  %123 = vmatpush1.bf16.msra.mxu0 0
  %124 = vmatprep.subr.bf16.mxu0 0
  %125 = vmatpush1.bf16.msra.mxu0 0
  %126 = vmatprep.subr.bf16.mxu0 0
  %127 = vmatpush1.bf16.msra.mxu0 0
  %128 = vmatprep.subr.bf16.mxu0 0
  %129 = vmatpush1.bf16.msra.mxu0 0
  %130 = vmatprep.mubr.bf16.mxu0 0
  %131 = vmatmul.mubr.bf16.gmra.mrb[0].mxu0 %v48
  %v132 = vpop.f32.mrb[0].mxu0
  %v133 = vadd.f32 %v43, %v132
  %v134 = vpop.f32.mrb[0].mxu0
  %v135 = vpop.f32.mrb[0].mxu0
  %v136 = vadd.f32 %v43, %v135
  %v137 = vpop.f32.mrb[0].mxu0
  %138 = vdwg.mxu0
  %v139 = vmul.f32 %v133, 0.5
  %v140 = vmul.f32 %v136, 0.5
  %v141 = vmul.f32 %v133, 0.70710677
  %v142 = vmul.f32 %v136, 0.70710677
  %v143 = verf.f32.pop %v141
  %v144 = verf.f32.pop %v142
  %v145 = vadd.f32 %v143, 1.0
  %v146 = vadd.f32 %v144, 1.0
  %v147 = vmul.f32 %v139, %v145
  %v148 = vmul.f32 %v140, %v146
  %149 = vadd.xlane.f32.xlu0 %v147
  %v150 = vpop.xlane.xlu0 %149
  %151 = vadd.xlane.f32.xlu0 %v148
  %v152 = vpop.xlane.xlu0 %151
  %v153 = vmul.f32 %v150, 0.03125
  %v154 = vmul.f32 %v152, 0.03125
  %v155 = vlaneseq
  %v156 = vand.u32 %v155, 127
  %vm157 = vcmp.lt.s32.totalorder %v156, 32
  %v158 = vsub.f32 %v147, %v153
  %v159 = vsub.f32 %v148, %v154
  %v160 = vsel %vm157, %v158, 0.0
  %v161 = vsel %vm157, %v159, 0.0
  %v162 = vmul.f32 %v160, %v160
  %v163 = vmul.f32 %v161, %v161
  %164 = vadd.xlane.f32.xlu0 %v162
  %v165 = vpop.xlane.xlu0 %164
  %166 = vadd.xlane.f32.xlu0 %v163
  %v167 = vpop.xlane.xlu0 %166
  %v168 = vmul.f32 %v165, 0.03125
  %v169 = vmul.f32 %v167, 0.03125
  %v170 = vadd.f32 %v168, 1e-12
  %v171 = vadd.f32 %v169, 1e-12
  %v172 = vrsqrt.pop %v170
  %v173 = vrsqrt.pop %v171
  %v174 = vmul.f32 %v160, %v172
  %v175 = vmul.f32 %v161, %v173
  %v176 = vld [vmem:[%s2 + $0x1] sm:$0x1]
  %v177 = vlaneseq
  %v178 = vshrl.u32 %v177, 7
  %v179 = vsub.s32 0, %v178
  %v180 = vrot.slane %v176, %v179
  %v181 = vmul.f32 %v174, %v180
  %v182 = vmul.f32 %v175, %v180
  %v183 = vld [vmem:[%s2 + $0x2] sm:$0x1]
  %v184 = vlaneseq
  %v185 = vshrl.u32 %v184, 7
  %v186 = vsub.s32 0, %v185
  %v187 = vrot.slane %v183, %v186
  %v188 = vadd.f32 %v181, %v187
  %v189 = vadd.f32 %v182, %v187
  %v190 = vpack.c.bf16 %v189, %v188
  %v191 = vld [vmem:[%s3] sm:$0xf]
  %v192 = vld [vmem:[%s3 + $0x4] sm:$0xf]
  %v193 = vld [vmem:[%s3 + $0x8] sm:$0xf]
  %v194 = vld [vmem:[%s3 + $0xc] sm:$0xf]
  %v195 = vld [vmem:[%s3 + $0x10] sm:$0xf]
  %v196 = vld [vmem:[%s3 + $0x14] sm:$0xf]
  %v197 = vld [vmem:[%s3 + $0x18] sm:$0xf]
  %v198 = vld [vmem:[%s3 + $0x1c] sm:$0xf]
  %v199 = vld [vmem:[%s3 + $0x20] sm:$0xf]
  %v200 = vld [vmem:[%s3 + $0x24] sm:$0xf]
  %v201 = vld [vmem:[%s3 + $0x28] sm:$0xf]
  %v202 = vld [vmem:[%s3 + $0x2c] sm:$0xf]
  %v203 = vld [vmem:[%s3 + $0x30] sm:$0xf]
  %v204 = vld [vmem:[%s3 + $0x34] sm:$0xf]
  %v205 = vld [vmem:[%s3 + $0x38] sm:$0xf]
  %v206 = vld [vmem:[%s3 + $0x3c] sm:$0xf]
  %v207 = vld [vmem:[%s4] sm:$0x1]
  %v209 = vlaneseq
  %v210 = vshrl.u32 %v209, 7
  %v211 = vsub.s32 0, %v210
  %v212 = vrot.slane %v207, %v211
  %v230 = vunpack.c.l.b16 %v191
  %v231 = vunpack.c.l.b16 %v192
  %v232 = vunpack.c.l.b16 %v193
  %v233 = vunpack.c.l.b16 %v194
  %v234 = vunpack.c.l.b16 %v195
  %v235 = vunpack.c.l.b16 %v196
  %v236 = vunpack.c.l.b16 %v197
  %v237 = vunpack.c.l.b16 %v198
  %v238 = vunpack.c.l.b16 %v199
  %v239 = vunpack.c.l.b16 %v200
  %v240 = vunpack.c.l.b16 %v201
  %v241 = vunpack.c.l.b16 %v202
  %v242 = vunpack.c.l.b16 %v203
  %v243 = vunpack.c.l.b16 %v204
  %v244 = vunpack.c.l.b16 %v205
  %v245 = vunpack.c.l.b16 %v206
  %v246 = vpack.c.b16 %v231, %v230
  %v247 = vpack.c.b16 %v233, %v232
  %v248 = vpack.c.b16 %v235, %v234
  %v249 = vpack.c.b16 %v237, %v236
  %v250 = vpack.c.b16 %v239, %v238
  %v251 = vpack.c.b16 %v241, %v240
  %v252 = vpack.c.b16 %v243, %v242
  %v253 = vpack.c.b16 %v245, %v244
  %262 = vmatprep.subr.bf16.mxu0 0
  %263 = vmatpush1.bf16.msra.mxu0 %v246
  %264 = vmatprep.subr.bf16.mxu0 0
  %265 = vmatpush1.bf16.msra.mxu0 %v247
  %266 = vmatprep.subr.bf16.mxu0 0
  %267 = vmatpush1.bf16.msra.mxu0 %v248
  %268 = vmatprep.subr.bf16.mxu0 0
  %269 = vmatpush1.bf16.msra.mxu0 %v249
  %270 = vmatprep.subr.bf16.mxu0 0
  %271 = vmatpush1.bf16.msra.mxu0 %v250
  %272 = vmatprep.subr.bf16.mxu0 0
  %273 = vmatpush1.bf16.msra.mxu0 %v251
  %274 = vmatprep.subr.bf16.mxu0 0
  %275 = vmatpush1.bf16.msra.mxu0 %v252
  %276 = vmatprep.subr.bf16.mxu0 0
  %277 = vmatpush1.bf16.msra.mxu0 %v253
  %278 = vmatprep.subr.bf16.mxu0 0
  %279 = vmatpush1.bf16.msra.mxu0 0
  %280 = vmatprep.subr.bf16.mxu0 0
  %281 = vmatpush1.bf16.msra.mxu0 0
  %282 = vmatprep.subr.bf16.mxu0 0
  %283 = vmatpush1.bf16.msra.mxu0 0
  %284 = vmatprep.subr.bf16.mxu0 0
  %285 = vmatpush1.bf16.msra.mxu0 0
  %286 = vmatprep.subr.bf16.mxu0 0
  %287 = vmatpush1.bf16.msra.mxu0 0
  %288 = vmatprep.subr.bf16.mxu0 0
  %289 = vmatpush1.bf16.msra.mxu0 0
  %290 = vmatprep.subr.bf16.mxu0 0
  %291 = vmatpush1.bf16.msra.mxu0 0
  %292 = vmatprep.subr.bf16.mxu0 0
  %293 = vmatpush1.bf16.msra.mxu0 0
  %294 = vmatprep.mubr.bf16.mxu0 0
  %295 = vmatmul.mubr.bf16.gmra.mrb[0].mxu0 %v190
  %v296 = vpop.f32.mrb[0].mxu0
  %v297 = vadd.f32 %v212, %v296
  %v298 = vpop.f32.mrb[0].mxu0
  %v299 = vpop.f32.mrb[0].mxu0
  %v300 = vadd.f32 %v212, %v299
  %v301 = vpop.f32.mrb[0].mxu0
  %302 = vdwg.mxu0
  %303 = vst [vmem:[%s5] sm:$0xff] %v297
  %304 = vst [vmem:[%s5 + $0x8] sm:$0xff] %v300
  // Predicated region
  $region22: #{mpp_head.1} parent=0 // pred_check
    _
  $region23: #{mpp_head.1} parent=0 // pred_check_branch
    %306 = sbr.rel (0) target = $region25
  $region24: #{mpp_head.1} parent=0 // pred_region
    _
  $region25: #{mpp_head.1} parent=0 // pred_fallthru
    _
  // Predicated region
  $region26: #{mpp_head.1} parent=0 // pred_check
    _
  $region27: #{mpp_head.1} parent=0 // pred_check_branch
    %308 = sbr.rel (0) target = $region29
  $region28: #{mpp_head.1} parent=0 // pred_region
    _
  $region29: #{mpp_head.1} parent=0 // pred_fallthru
    _

// kernel: mpp_head.1
$region0: #{mpp_head.1}
  #allocation0 [shape = 'u32[]', space=smem, size = 0x4, offset = 0x4, fixed_abs, tag = 'smem constant byte address 0x4 - core index']
  #allocation1 [shape = 'u32[144,128]{1,0:T(1,128)}', space=vmem, size = 0x12000, scoped, tag = 'internal scratch']
  %s0 = inlined_call_operand.vmem [shape: bf16[16,128], index: 0, kind: input, shape index: {}]
  %s1 = inlined_call_operand.vmem [shape: bf16[128,128], index: 1, kind: input, shape index: {}]
  %s2 = inlined_call_operand.vmem [shape: f32[8,128], index: 2, kind: input, shape index: {}]
  %s3 = inlined_call_operand.vmem [shape: bf16[128,128], index: 3, kind: input, shape index: {}]
  %s4 = inlined_call_operand.vmem [shape: f32[1,128], index: 4, kind: input, shape index: {}]
  %s5 = inlined_call_operand.vmem [shape: f32[16,128], index: 5, kind: output, shape index: {}]
  %s6 = sld [smem:[#allocation0]]
  $region30: #{mpp_head.1} parent=0
    _
  %s8 = ssub.s32 1, %s6
  %s9 = scalar_select 0, %s8, %s6
  // Predicated region
  $region2: #{mpp_head.1} parent=0 // pred_check
    _
  $region3: #{mpp_head.1} parent=0 // pred_check_branch
    %11 = sbr.rel (0) target = $region5
  $region4: #{mpp_head.1} parent=0 // pred_region
    _
  $region5: #{mpp_head.1} parent=0 // pred_fallthru
    _
  // Predicated region
  $region6: #{mpp_head.1} parent=0 // pred_check
    _
  $region7: #{mpp_head.1} parent=0 // pred_check_branch
    %13 = sbr.rel (0) target = $region9
  $region8: #{mpp_head.1} parent=0 // pred_region
    _
  $region9: #{mpp_head.1} parent=0 // pred_fallthru
    _
  // Predicated region
  $region10: #{mpp_head.1} parent=0 // pred_check
    _
  $region11: #{mpp_head.1} parent=0 // pred_check_branch
    %15 = sbr.rel (0) target = $region13
  $region12: #{mpp_head.1} parent=0 // pred_region
    _
  $region13: #{mpp_head.1} parent=0 // pred_fallthru
    _
  // Predicated region
  $region14: #{mpp_head.1} parent=0 // pred_check
    _
  $region15: #{mpp_head.1} parent=0 // pred_check_branch
    %17 = sbr.rel (0) target = $region17
  $region16: #{mpp_head.1} parent=0 // pred_region
    _
  $region17: #{mpp_head.1} parent=0 // pred_fallthru
    _
  // Predicated region
  $region18: #{mpp_head.1} parent=0 // pred_check
    _
  $region19: #{mpp_head.1} parent=0 // pred_check_branch
    %19 = sbr.rel (0) target = $region21
  $region20: #{mpp_head.1} parent=0 // pred_region
    _
  $region21: #{mpp_head.1} parent=0 // pred_fallthru
    _
  %v21 = vld [vmem:[%s0] sm:$0xf]
  %v22 = vld [vmem:[%s0 + $0x4] sm:$0xf]
  %v23 = vld [vmem:[%s1] sm:$0xf]
  %v24 = vld [vmem:[%s1 + $0x4] sm:$0xf]
  %v25 = vld [vmem:[%s1 + $0x8] sm:$0xf]
  %v26 = vld [vmem:[%s1 + $0xc] sm:$0xf]
  %v27 = vld [vmem:[%s1 + $0x10] sm:$0xf]
  %v28 = vld [vmem:[%s1 + $0x14] sm:$0xf]
  %v29 = vld [vmem:[%s1 + $0x18] sm:$0xf]
  %v30 = vld [vmem:[%s1 + $0x1c] sm:$0xf]
  %v31 = vld [vmem:[%s1 + $0x20] sm:$0xf]
  %v32 = vld [vmem:[%s1 + $0x24] sm:$0xf]
  %v33 = vld [vmem:[%s1 + $0x28] sm:$0xf]
  %v34 = vld [vmem:[%s1 + $0x2c] sm:$0xf]
  %v35 = vld [vmem:[%s1 + $0x30] sm:$0xf]
  %v36 = vld [vmem:[%s1 + $0x34] sm:$0xf]
  %v37 = vld [vmem:[%s1 + $0x38] sm:$0xf]
  %v38 = vld [vmem:[%s1 + $0x3c] sm:$0xf]
  %v39 = vld [vmem:[%s2] sm:$0x1]
  %v40 = vlaneseq
  %v41 = vshrl.u32 %v40, 7
  %v42 = vsub.s32 0, %v41
  %v43 = vrot.slane %v39, %v42
  %v46 = vunpack.c.l.b16 %v21
  %v47 = vunpack.c.l.b16 %v22
  %v48 = vpack.c.b16 %v47, %v46
  %v66 = vunpack.c.l.b16 %v23
  %v67 = vunpack.c.l.b16 %v24
  %v68 = vunpack.c.l.b16 %v25
  %v69 = vunpack.c.l.b16 %v26
  %v70 = vunpack.c.l.b16 %v27
  %v71 = vunpack.c.l.b16 %v28
  %v72 = vunpack.c.l.b16 %v29
  %v73 = vunpack.c.l.b16 %v30
  %v74 = vunpack.c.l.b16 %v31
  %v75 = vunpack.c.l.b16 %v32
  %v76 = vunpack.c.l.b16 %v33
  %v77 = vunpack.c.l.b16 %v34
  %v78 = vunpack.c.l.b16 %v35
  %v79 = vunpack.c.l.b16 %v36
  %v80 = vunpack.c.l.b16 %v37
  %v81 = vunpack.c.l.b16 %v38
  %v82 = vpack.c.b16 %v67, %v66
  %v83 = vpack.c.b16 %v69, %v68
  %v84 = vpack.c.b16 %v71, %v70
  %v85 = vpack.c.b16 %v73, %v72
  %v86 = vpack.c.b16 %v75, %v74
  %v87 = vpack.c.b16 %v77, %v76
  %v88 = vpack.c.b16 %v79, %v78
  %v89 = vpack.c.b16 %v81, %v80
  %98 = vmatprep.subr.bf16.mxu0 0
  %99 = vmatpush1.bf16.msra.mxu0 %v82
  %100 = vmatprep.subr.bf16.mxu0 0
  %101 = vmatpush1.bf16.msra.mxu0 %v83
  %102 = vmatprep.subr.bf16.mxu0 0
  %103 = vmatpush1.bf16.msra.mxu0 %v84
  %104 = vmatprep.subr.bf16.mxu0 0
  %105 = vmatpush1.bf16.msra.mxu0 %v85
  %106 = vmatprep.subr.bf16.mxu0 0
  %107 = vmatpush1.bf16.msra.mxu0 %v86
  %108 = vmatprep.subr.bf16.mxu0 0
  %109 = vmatpush1.bf16.msra.mxu0 %v87
  %110 = vmatprep.subr.bf16.mxu0 0
  %111 = vmatpush1.bf16.msra.mxu0 %v88
  %112 = vmatprep.subr.bf16.mxu0 0
  %113 = vmatpush1.bf16.msra.mxu0 %v89
  %114 = vmatprep.subr.bf16.mxu0 0
  %115 = vmatpush1.bf16.msra.mxu0 0
  %116 = vmatprep.subr.bf16.mxu0 0
  %117 = vmatpush1.bf16.msra.mxu0 0
  %118 = vmatprep.subr.bf16.mxu0 0
  %119 = vmatpush1.bf16.msra.mxu0 0
  %120 = vmatprep.subr.bf16.mxu0 0
  %121 = vmatpush1.bf16.msra.mxu0 0
  %122 = vmatprep.subr.bf16.mxu0 0
  %123 = vmatpush1.bf16.msra.mxu0 0
  %124 = vmatprep.subr.bf16.mxu0 0
  %125 = vmatpush1.bf16.msra.mxu0 0
  %126 = vmatprep.subr.bf16.mxu0 0
  %127 = vmatpush1.bf16.msra.mxu0 0
  %128 = vmatprep.subr.bf16.mxu0 0
  %129 = vmatpush1.bf16.msra.mxu0 0
  %130 = vmatprep.mubr.bf16.mxu0 0
  %131 = vmatmul.mubr.bf16.gmra.mrb[0].mxu0 %v48
  %v132 = vpop.f32.mrb[0].mxu0
  %v133 = vadd.f32 %v43, %v132
  %v134 = vpop.f32.mrb[0].mxu0
  %v135 = vpop.f32.mrb[0].mxu0
  %v136 = vadd.f32 %v43, %v135
  %v137 = vpop.f32.mrb[0].mxu0
  %138 = vdwg.mxu0
  %v139 = vmul.f32 %v133, 0.5
  %v140 = vmul.f32 %v136, 0.5
  %v141 = vmul.f32 %v133, 0.70710677
  %v142 = vmul.f32 %v136, 0.70710677
  %v143 = verf.f32.pop %v141
  %v144 = verf.f32.pop %v142
  %v145 = vadd.f32 %v143, 1.0
  %v146 = vadd.f32 %v144, 1.0
  %v147 = vmul.f32 %v139, %v145
  %v148 = vmul.f32 %v140, %v146
  %149 = vadd.xlane.f32.xlu0 %v147
  %v150 = vpop.xlane.xlu0 %149
  %151 = vadd.xlane.f32.xlu0 %v148
  %v152 = vpop.xlane.xlu0 %151
  %v153 = vmul.f32 %v150, 0.03125
  %v154 = vmul.f32 %v152, 0.03125
  %v155 = vlaneseq
  %v156 = vand.u32 %v155, 127
  %vm157 = vcmp.lt.s32.totalorder %v156, 32
  %v158 = vsub.f32 %v147, %v153
  %v159 = vsub.f32 %v148, %v154
  %v160 = vsel %vm157, %v158, 0.0
  %v161 = vsel %vm157, %v159, 0.0
  %v162 = vmul.f32 %v160, %v160
  %v163 = vmul.f32 %v161, %v161
  %164 = vadd.xlane.f32.xlu0 %v162
  %v165 = vpop.xlane.xlu0 %164
  %166 = vadd.xlane.f32.xlu0 %v163
  %v167 = vpop.xlane.xlu0 %166
  %v168 = vmul.f32 %v165, 0.03125
  %v169 = vmul.f32 %v167, 0.03125
  %v170 = vadd.f32 %v168, 1e-12
  %v171 = vadd.f32 %v169, 1e-12
  %v172 = vrsqrt.pop %v170
  %v173 = vrsqrt.pop %v171
  %v174 = vmul.f32 %v160, %v172
  %v175 = vmul.f32 %v161, %v173
  %v176 = vld [vmem:[%s2 + $0x1] sm:$0x1]
  %v177 = vlaneseq
  %v178 = vshrl.u32 %v177, 7
  %v179 = vsub.s32 0, %v178
  %v180 = vrot.slane %v176, %v179
  %v181 = vmul.f32 %v174, %v180
  %v182 = vmul.f32 %v175, %v180
  %v183 = vld [vmem:[%s2 + $0x2] sm:$0x1]
  %v184 = vlaneseq
  %v185 = vshrl.u32 %v184, 7
  %v186 = vsub.s32 0, %v185
  %v187 = vrot.slane %v183, %v186
  %v188 = vadd.f32 %v181, %v187
  %v189 = vadd.f32 %v182, %v187
  %v190 = vpack.c.bf16 %v189, %v188
  %v191 = vld [vmem:[%s3] sm:$0xf]
  %v192 = vld [vmem:[%s3 + $0x4] sm:$0xf]
  %v193 = vld [vmem:[%s3 + $0x8] sm:$0xf]
  %v194 = vld [vmem:[%s3 + $0xc] sm:$0xf]
  %v195 = vld [vmem:[%s3 + $0x10] sm:$0xf]
  %v196 = vld [vmem:[%s3 + $0x14] sm:$0xf]
  %v197 = vld [vmem:[%s3 + $0x18] sm:$0xf]
  %v198 = vld [vmem:[%s3 + $0x1c] sm:$0xf]
  %v199 = vld [vmem:[%s3 + $0x20] sm:$0xf]
  %v200 = vld [vmem:[%s3 + $0x24] sm:$0xf]
  %v201 = vld [vmem:[%s3 + $0x28] sm:$0xf]
  %v202 = vld [vmem:[%s3 + $0x2c] sm:$0xf]
  %v203 = vld [vmem:[%s3 + $0x30] sm:$0xf]
  %v204 = vld [vmem:[%s3 + $0x34] sm:$0xf]
  %v205 = vld [vmem:[%s3 + $0x38] sm:$0xf]
  %v206 = vld [vmem:[%s3 + $0x3c] sm:$0xf]
  %v207 = vld [vmem:[%s4] sm:$0x1]
  %v209 = vlaneseq
  %v210 = vshrl.u32 %v209, 7
  %v211 = vsub.s32 0, %v210
  %v212 = vrot.slane %v207, %v211
  %v230 = vunpack.c.l.b16 %v191
  %v231 = vunpack.c.l.b16 %v192
  %v232 = vunpack.c.l.b16 %v193
  %v233 = vunpack.c.l.b16 %v194
  %v234 = vunpack.c.l.b16 %v195
  %v235 = vunpack.c.l.b16 %v196
  %v236 = vunpack.c.l.b16 %v197
  %v237 = vunpack.c.l.b16 %v198
  %v238 = vunpack.c.l.b16 %v199
  %v239 = vunpack.c.l.b16 %v200
  %v240 = vunpack.c.l.b16 %v201
  %v241 = vunpack.c.l.b16 %v202
  %v242 = vunpack.c.l.b16 %v203
  %v243 = vunpack.c.l.b16 %v204
  %v244 = vunpack.c.l.b16 %v205
  %v245 = vunpack.c.l.b16 %v206
  %v246 = vpack.c.b16 %v231, %v230
  %v247 = vpack.c.b16 %v233, %v232
  %v248 = vpack.c.b16 %v235, %v234
  %v249 = vpack.c.b16 %v237, %v236
  %v250 = vpack.c.b16 %v239, %v238
  %v251 = vpack.c.b16 %v241, %v240
  %v252 = vpack.c.b16 %v243, %v242
  %v253 = vpack.c.b16 %v245, %v244
  %262 = vmatprep.subr.bf16.mxu0 0
  %263 = vmatpush1.bf16.msra.mxu0 %v246
  %264 = vmatprep.subr.bf16.mxu0 0
  %265 = vmatpush1.bf16.msra.mxu0 %v247
  %266 = vmatprep.subr.bf16.mxu0 0
  %267 = vmatpush1.bf16.msra.mxu0 %v248
  %268 = vmatprep.subr.bf16.mxu0 0
  %269 = vmatpush1.bf16.msra.mxu0 %v249
  %270 = vmatprep.subr.bf16.mxu0 0
  %271 = vmatpush1.bf16.msra.mxu0 %v250
  %272 = vmatprep.subr.bf16.mxu0 0
  %273 = vmatpush1.bf16.msra.mxu0 %v251
  %274 = vmatprep.subr.bf16.mxu0 0
  %275 = vmatpush1.bf16.msra.mxu0 %v252
  %276 = vmatprep.subr.bf16.mxu0 0
  %277 = vmatpush1.bf16.msra.mxu0 %v253
  %278 = vmatprep.subr.bf16.mxu0 0
  %279 = vmatpush1.bf16.msra.mxu0 0
  %280 = vmatprep.subr.bf16.mxu0 0
  %281 = vmatpush1.bf16.msra.mxu0 0
  %282 = vmatprep.subr.bf16.mxu0 0
  %283 = vmatpush1.bf16.msra.mxu0 0
  %284 = vmatprep.subr.bf16.mxu0 0
  %285 = vmatpush1.bf16.msra.mxu0 0
  %286 = vmatprep.subr.bf16.mxu0 0
  %287 = vmatpush1.bf16.msra.mxu0 0
  %288 = vmatprep.subr.bf16.mxu0 0
  %289 = vmatpush1.bf16.msra.mxu0 0
  %290 = vmatprep.subr.bf16.mxu0 0
  %291 = vmatpush1.bf16.msra.mxu0 0
  %292 = vmatprep.subr.bf16.mxu0 0
  %293 = vmatpush1.bf16.msra.mxu0 0
  %294 = vmatprep.mubr.bf16.mxu0 0
  %295 = vmatmul.mubr.bf16.gmra.mrb[0].mxu0 %v190
  %v296 = vpop.f32.mrb[0].mxu0
  %v297 = vadd.f32 %v212, %v296
  %v298 = vpop.f32.mrb[0].mxu0
  %v299 = vpop.f32.mrb[0].mxu0
  %v300 = vadd.f32 %v212, %v299
  %v301 = vpop.f32.mrb[0].mxu0
  %302 = vdwg.mxu0
  %303 = vst [vmem:[%s5] sm:$0xff] %v297
  %304 = vst [vmem:[%s5 + $0x8] sm:$0xff] %v300
  // Predicated region
  $region22: #{mpp_head.1} parent=0 // pred_check
    _
  $region23: #{mpp_head.1} parent=0 // pred_check_branch
    %306 = sbr.rel (0) target = $region25
  $region24: #{mpp_head.1} parent=0 // pred_region
    _
  $region25: #{mpp_head.1} parent=0 // pred_fallthru
    _
  // Predicated region
  $region26: #{mpp_head.1} parent=0 // pred_check
    _
  $region27: #{mpp_head.1} parent=0 // pred_check_branch
    %308 = sbr.rel (0) target = $region29
  $region28: #{mpp_head.1} parent=0 // pred_region
    _
  $region29: #{mpp_head.1} parent=0 // pred_fallthru
    _

</llo_original>
